<compile_context>
chip_gen: v6e
topology: v6e:2x2x1
jax: 0.10.0
libtpu: 0.0.40
codegen_flags: <defaults>
</compile_context>

<pallas_src>
import functools

import jax
import jax.numpy as jnp
from jax import lax
from jax.experimental import pallas as pl
from jax.experimental.pallas import tpu as pltpu


def _round_up(x: int, m: int) -> int:
    return (x + m - 1) // m * m


def image_proj_kernel(x_ref, w_ref, b_ref, g_ref, bt_ref, o_ref, acc_ref, *,
                      tokens_per_tile, d_cross, eps, precision):
    # Wide MXU matmul in native dtype, f32 accumulate, into the explicit VMEM scratch.
    acc_ref[...] = (
        jnp.dot(x_ref[...], w_ref[...],
                preferred_element_type=jnp.float32, precision=precision)
        + b_ref[...].astype(jnp.float32)          # [1, TN] bias, broadcast over sublanes
    )

    inv_d = jnp.float32(1.0 / d_cross)
    # Per-token LayerNorm statistics: one-pass mean / E[x^2]; the two cross-lane
    # reductions are independent so they can issue back to back on the XLU.
    for t in range(tokens_per_tile):              # static, small unrolled loop
        lo = t * d_cross
        seg = acc_ref[:, lo:lo + d_cross]         # [TB, cross] (lane-aligned when cross%128==0)
        s1 = jnp.sum(seg, axis=-1, keepdims=True)
        s2 = jnp.sum(seg * seg, axis=-1, keepdims=True)
        mean = s1 * inv_d
        var = jnp.maximum(s2 * inv_d - mean * mean, 0.0)   # guard tiny negatives
        acc_ref[:, lo:lo + d_cross] = (seg - mean) * lax.rsqrt(var + eps)

    # Single wide affine epilogue + cast: gamma/beta arrive pre-tiled to [1, TN] so the
    # broadcast happens once and the result leaves in one lane-dense store.
    o_ref[...] = (acc_ref[...] * g_ref[...].astype(jnp.float32)
                  + bt_ref[...].astype(jnp.float32)).astype(o_ref.dtype)


def image_proj_model(image_embeds, w, b, gamma, beta, *, num_tokens,
                     out_dtype=None, block_b=512, precision=None):
    """image_embeds: [B, clip_dim] -> [B, num_tokens, cross_dim].

    w: [clip_dim, num_tokens*cross_dim], b: [num_tokens*cross_dim],
    gamma/beta: [cross_dim] (LayerNorm affine).
    """
    B, d_clip = image_embeds.shape
    d_total = w.shape[1]
    assert d_total % num_tokens == 0
    d_cross = d_total // num_tokens
    out_dtype = out_dtype or image_embeds.dtype

    # TODO(synk): if d_cross % 128 != 0, pad each token's weight/bias/gamma columns to a
    # multiple of 128 in the wrapper so the per-token LN segments stay lane-aligned; the
    # kernel below is still correct for unaligned d_cross, just slower (relayout copies).

    x_isz = jnp.dtype(image_embeds.dtype).itemsize
    w_isz = jnp.dtype(w.dtype).itemsize
    o_isz = jnp.dtype(out_dtype).itemsize
    p_isz = max(jnp.dtype(b.dtype).itemsize, jnp.dtype(gamma.dtype).itemsize)

    # Batch tile: multiple of 16 for sub-32-bit dtypes (bf16 sublane packing), else 8.
    sub = 16 if x_isz < 4 else 8
    TB = _round_up(min(block_b, B), sub)
    Bp = _round_up(B, TB)
    if Bp != B:
        image_embeds = jnp.pad(image_embeds, ((0, Bp - B), (0, 0)))
    grid_b = Bp // TB

    # Physical VMEM for this chip generation (v5e/v6e: 128 MiB, v7x: 64 MiB).
    try:
        vmem_cap = int(getattr(pltpu.get_tpu_info(), "vmem_capacity_bytes", 64 << 20))
    except Exception:
        vmem_cap = 64 << 20          # conservative (v7x) fallback
    budget = min(int(vmem_cap * 0.7), 96 << 20)

    def footprint(tpt):
        TN = tpt * d_cross
        n_steps = num_tokens // tpt
        w_bufs = 1 if n_steps == 1 else 2                       # single-buffer invariant panel
        return ((d_clip * TN * w_isz + 3 * TN * p_isz) * w_bufs  # weight panel + bias/LN params
                + 2 * TB * d_clip * x_isz                        # double-buffered x tiles
                + 2 * TB * TN * o_isz                            # double-buffered out tiles
                + TB * TN * 4)                                   # f32 matmul/LN scratch

    # Tokens per N-tile: largest divisor of num_tokens whose footprint fits the budget.
    candidates = [t for t in range(num_tokens, 0, -1) if num_tokens % t == 0]
    tpt = 1
    for t in candidates:
        if footprint(t) <= budget:
            tpt = t
            break
    # If the batch grid collapses to one step, split tokens across >=2 grid steps so the
    # second TensorCore on v7x has work (small-batch inference latency win).
    if grid_b == 1 and num_tokens > 1 and tpt == num_tokens:
        tpt = max(t for t in candidates if t < num_tokens)

    TN = tpt * d_cross
    grid_n = num_tokens // tpt
    invariant = (grid_n == 1)        # weight / bias / LN params constant across the grid

    # Accurate VMEM budget (includes the f32 intermediate as explicit scratch).
    vmem_needed = footprint(tpt)
    vmem_limit = int(min(max(vmem_needed + (4 << 20), 16 << 20), int(vmem_cap * 0.9)))

    # Params as 2-D rows; gamma/beta pre-tiled to the full projection width so the
    # kernel applies the LN affine on the whole slab in one epilogue.
    b2 = b.reshape(1, d_total)
    g2 = jnp.tile(gamma.reshape(1, d_cross), (1, num_tokens))
    bt2 = jnp.tile(beta.reshape(1, d_cross), (1, num_tokens))

    kernel = functools.partial(image_proj_kernel, tokens_per_tile=tpt,
                               d_cross=d_cross, eps=1e-5, precision=precision)

    def _param_spec(shape, index_map, single_buffer):
        if single_buffer:
            return pl.BlockSpec(shape, index_map, pipeline_mode=pl.Buffered(1))
        return pl.BlockSpec(shape, index_map)

    def _run(single_buffer_params):
        call = pl.pallas_call(
            kernel,
            out_shape=jax.ShapeDtypeStruct((Bp, d_total), out_dtype),
            grid=(grid_b, grid_n),
            in_specs=[
                pl.BlockSpec((TB, d_clip), lambda i, j: (i, 0)),       # x: tiled over batch
                _param_spec((d_clip, TN), lambda i, j: (0, j), single_buffer_params),  # W panel
                _param_spec((1, TN), lambda i, j: (0, j), single_buffer_params),       # bias
                _param_spec((1, TN), lambda i, j: (0, j), single_buffer_params),       # gamma
                _param_spec((1, TN), lambda i, j: (0, j), single_buffer_params),       # beta
            ],
            out_specs=pl.BlockSpec((TB, TN), lambda i, j: (i, j)),     # lane-dense output slab
            scratch_shapes=[pltpu.VMEM((TB, TN), jnp.float32)],        # explicit f32 intermediate
            compiler_params=pltpu.CompilerParams(
                dimension_semantics=("parallel", "parallel"),
                vmem_limit_bytes=vmem_limit,
            ),
        )
        return call(image_embeds, w, b2, g2, bt2)

    if invariant:
        try:
            out2d = _run(True)           # single-buffer the grid-invariant operands
        except Exception:                # fallback if pipeline_mode is unsupported here
            out2d = _run(False)
    else:
        out2d = _run(False)              # N-tiled weights: keep double buffering for overlap

    # Token reshape done outside the kernel (layout plumbing, not compute).
    return out2d.reshape(Bp, num_tokens, d_cross)[:B]


def reference(image_embeds, w, b, gamma, beta, num_tokens):
    x = image_embeds.astype(jnp.float32)
    y = x @ w.astype(jnp.float32) + b.astype(jnp.float32)
    d_cross = w.shape[1] // num_tokens
    y = y.reshape(-1, num_tokens, d_cross)
    mean = jnp.mean(y, axis=-1, keepdims=True)
    var = jnp.mean((y - mean) ** 2, axis=-1, keepdims=True)
    return (y - mean) * lax.rsqrt(var + 1e-5) * gamma.astype(jnp.float32) + beta.astype(jnp.float32)


if __name__ == "__main__":
    # Small shapes consistent with ImageProjModel.forward: [batch, clip_embeddings_dim].
    batch = 8
    clip_embeddings_dim = 256
    cross_attention_dim = 128
    clip_extra_context_tokens = 4
    d_total = clip_extra_context_tokens * cross_attention_dim

    key = jax.random.PRNGKey(0)
    kx, kw, kb, kg, kbe = jax.random.split(key, 5)

    x = jax.random.normal(kx, (batch, clip_embeddings_dim), jnp.float32)
    w = jax.random.normal(kw, (clip_embeddings_dim, d_total), jnp.float32) * 0.02
    b = jax.random.normal(kb, (d_total,), jnp.float32) * 0.01
    gamma = 1.0 + 0.1 * jax.random.normal(kg, (cross_attention_dim,), jnp.float32)
    beta = 0.1 * jax.random.normal(kbe, (cross_attention_dim,), jnp.float32)

    # --- f32 path (tolerances account for MXU matmul precision vs XLA reference) ---
    out = image_proj_model(x, w, b, gamma, beta, num_tokens=clip_extra_context_tokens)
    out = jax.block_until_ready(out)
    ref = reference(x, w, b, gamma, beta, clip_extra_context_tokens)
    assert out.shape == (batch, clip_extra_context_tokens, cross_attention_dim)
    assert jnp.allclose(out.astype(jnp.float32), ref, atol=2e-2, rtol=2e-2), "f32 mismatch"

    # --- bf16 fast path: weights + activations fed natively to the MXU ---
    x16 = x.astype(jnp.bfloat16)
    w16 = w.astype(jnp.bfloat16)
    b16 = b.astype(jnp.bfloat16)
    g16 = gamma.astype(jnp.bfloat16)
    be16 = beta.astype(jnp.bfloat16)
    out16 = image_proj_model(x16, w16, b16, g16, be16, num_tokens=clip_extra_context_tokens)
    out16 = jax.block_until_ready(out16)
    ref16 = reference(x16, w16, b16, g16, be16, clip_extra_context_tokens)
    assert out16.shape == (batch, clip_extra_context_tokens, cross_attention_dim)
    assert jnp.allclose(out16.astype(jnp.float32), ref16, atol=6e-2, rtol=6e-2), "bf16 mismatch"

    # --- multi-batch-tile path: grid over batch > 1 step, single (invariant) N tile ---
    batch_l = 64
    xl = jax.random.normal(jax.random.PRNGKey(1), (batch_l, clip_embeddings_dim), jnp.float32)
    out_l = image_proj_model(xl, w, b, gamma, beta,
                             num_tokens=clip_extra_context_tokens, block_b=32)
    out_l = jax.block_until_ready(out_l)
    ref_l = reference(xl, w, b, gamma, beta, clip_extra_context_tokens)
    assert out_l.shape == (batch_l, clip_extra_context_tokens, cross_attention_dim)
    assert jnp.allclose(out_l.astype(jnp.float32), ref_l, atol=2e-2, rtol=2e-2), "batched mismatch"

    print("KERNEL_OK")
</pallas_src>

<mosaic_0001>
module attributes {stable_mosaic.version = 11 : i64} {
  func.func @image_proj_kernel(%arg0: i32, %arg1: i32, %arg2: memref<8x256xf32, #tpu.memory_space<vmem>>, %arg3: memref<256x256xf32, #tpu.memory_space<vmem>>, %arg4: memref<1x256xf32, #tpu.memory_space<vmem>>, %arg5: memref<1x256xf32, #tpu.memory_space<vmem>>, %arg6: memref<1x256xf32, #tpu.memory_space<vmem>>, %arg7: memref<8x256xf32, #tpu.memory_space<vmem>>, %arg8: memref<8x256xf32, #tpu.memory_space<vmem>>) attributes {dimension_semantics = [#tpu.dimension_semantics<parallel>, #tpu.dimension_semantics<parallel>], iteration_bounds = array<i64: 1, 2>, scalar_prefetch = 0 : i64, scratch_operands = 1 : i64, tpu.core_type = #tpu.core_type<tc>, window_params = [{transform_indices = @transform_0, window_bounds = array<i64: 8, 256>}, {transform_indices = @transform_1, window_bounds = array<i64: 256, 256>}, {transform_indices = @transform_2, window_bounds = array<i64: 1, 256>}, {transform_indices = @transform_3, window_bounds = array<i64: 1, 256>}, {transform_indices = @transform_4, window_bounds = array<i64: 1, 256>}, {transform_indices = @transform_5, window_bounds = array<i64: 8, 256>}]} {
    %c0 = arith.constant 0 : index
    %c0_0 = arith.constant 0 : index
    %0 = vector.load %arg2[%c0, %c0_0] : memref<8x256xf32, #tpu.memory_space<vmem>>, vector<8x256xf32>
    %c0_1 = arith.constant 0 : index
    %c0_2 = arith.constant 0 : index
    %1 = vector.load %arg3[%c0_1, %c0_2] : memref<256x256xf32, #tpu.memory_space<vmem>>, vector<256x256xf32>
    %cst = arith.constant dense<0.000000e+00> : vector<8x256xf32>
    %2 = tpu.matmul %0, %1, %cst {dimension_numbers = #tpu.dot_dimension_numbers<[1], [0], [0], [1], [0, 0, 1, 1], [], []>} : vector<8x256xf32>, vector<256x256xf32>, vector<8x256xf32> -> vector<8x256xf32>
    %c0_3 = arith.constant 0 : index
    %c0_4 = arith.constant 0 : index
    %3 = vector.load %arg4[%c0_3, %c0_4] : memref<1x256xf32, #tpu.memory_space<vmem>>, vector<1x256xf32>
    %4 = vector.broadcast %3 : vector<1x256xf32> to vector<8x256xf32>
    %5 = arith.addf %2, %4 : vector<8x256xf32>
    %c0_5 = arith.constant 0 : index
    %c0_6 = arith.constant 0 : index
    %6 = vector.load %arg8[%c0_5, %c0_6] : memref<8x256xf32, #tpu.memory_space<vmem>>, vector<8x256xf32>
    tpu.vector_store %arg8[%c0_5, %c0_6], %5 {strides = array<i32>} : memref<8x256xf32, #tpu.memory_space<vmem>>, vector<8x256xf32>,
    %c0_7 = arith.constant 0 : index
    %c0_8 = arith.constant 0 : index
    %7 = vector.load %arg8[%c0_7, %c0_8] : memref<8x256xf32, #tpu.memory_space<vmem>>, vector<8x128xf32>
    %cst_9 = arith.constant dense<0.000000e+00> : vector<8xf32>
    %8 = vector.multi_reduction <add>, %7, %cst_9 [1] : vector<8x128xf32> to vector<8xf32>
    %9 = vector.shape_cast %8 : vector<8xf32> to vector<8x1xf32>
    %10 = arith.mulf %7, %7 : vector<8x128xf32>
    %cst_10 = arith.constant dense<0.000000e+00> : vector<8xf32>
    %11 = vector.multi_reduction <add>, %10, %cst_10 [1] : vector<8x128xf32> to vector<8xf32>
    %12 = vector.shape_cast %11 : vector<8xf32> to vector<8x1xf32>
    %cst_11 = arith.constant 7.812500e-03 : f32
    %13 = vector.broadcast %cst_11 : f32 to vector<8x1xf32>
    %14 = arith.mulf %9, %13 : vector<8x1xf32>
    %cst_12 = arith.constant 7.812500e-03 : f32
    %15 = vector.broadcast %cst_12 : f32 to vector<8x1xf32>
    %16 = arith.mulf %12, %15 : vector<8x1xf32>
    %17 = arith.mulf %14, %14 : vector<8x1xf32>
    %18 = arith.subf %16, %17 : vector<8x1xf32>
    %cst_13 = arith.constant 0.000000e+00 : f32
    %19 = vector.broadcast %cst_13 : f32 to vector<8x1xf32>
    %20 = arith.maximumf %18, %19 : vector<8x1xf32>
    %21 = vector.broadcast %14 : vector<8x1xf32> to vector<8x128xf32>
    %22 = arith.subf %7, %21 : vector<8x128xf32>
    %cst_14 = arith.constant 9.99999974E-6 : f32
    %23 = vector.broadcast %cst_14 : f32 to vector<8x1xf32>
    %24 = arith.addf %20, %23 : vector<8x1xf32>
    %25 = math.rsqrt %24 : vector<8x1xf32>
    %26 = vector.broadcast %25 : vector<8x1xf32> to vector<8x128xf32>
    %27 = arith.mulf %22, %26 : vector<8x128xf32>
    %c0_15 = arith.constant 0 : index
    %c0_16 = arith.constant 0 : index
    %28 = vector.load %arg8[%c0_15, %c0_16] : memref<8x256xf32, #tpu.memory_space<vmem>>, vector<8x128xf32>
    tpu.vector_store %arg8[%c0_15, %c0_16], %27 {strides = array<i32>} : memref<8x256xf32, #tpu.memory_space<vmem>>, vector<8x128xf32>,
    %c0_17 = arith.constant 0 : index
    %c128 = arith.constant 128 : index
    %29 = vector.load %arg8[%c0_17, %c128] : memref<8x256xf32, #tpu.memory_space<vmem>>, vector<8x128xf32>
    %cst_18 = arith.constant dense<0.000000e+00> : vector<8xf32>
    %30 = vector.multi_reduction <add>, %29, %cst_18 [1] : vector<8x128xf32> to vector<8xf32>
    %31 = vector.shape_cast %30 : vector<8xf32> to vector<8x1xf32>
    %32 = arith.mulf %29, %29 : vector<8x128xf32>
    %cst_19 = arith.constant dense<0.000000e+00> : vector<8xf32>
    %33 = vector.multi_reduction <add>, %32, %cst_19 [1] : vector<8x128xf32> to vector<8xf32>
    %34 = vector.shape_cast %33 : vector<8xf32> to vector<8x1xf32>
    %cst_20 = arith.constant 7.812500e-03 : f32
    %35 = vector.broadcast %cst_20 : f32 to vector<8x1xf32>
    %36 = arith.mulf %31, %35 : vector<8x1xf32>
    %cst_21 = arith.constant 7.812500e-03 : f32
    %37 = vector.broadcast %cst_21 : f32 to vector<8x1xf32>
    %38 = arith.mulf %34, %37 : vector<8x1xf32>
    %39 = arith.mulf %36, %36 : vector<8x1xf32>
    %40 = arith.subf %38, %39 : vector<8x1xf32>
    %cst_22 = arith.constant 0.000000e+00 : f32
    %41 = vector.broadcast %cst_22 : f32 to vector<8x1xf32>
    %42 = arith.maximumf %40, %41 : vector<8x1xf32>
    %43 = vector.broadcast %36 : vector<8x1xf32> to vector<8x128xf32>
    %44 = arith.subf %29, %43 : vector<8x128xf32>
    %cst_23 = arith.constant 9.99999974E-6 : f32
    %45 = vector.broadcast %cst_23 : f32 to vector<8x1xf32>
    %46 = arith.addf %42, %45 : vector<8x1xf32>
    %47 = math.rsqrt %46 : vector<8x1xf32>
    %48 = vector.broadcast %47 : vector<8x1xf32> to vector<8x128xf32>
    %49 = arith.mulf %44, %48 : vector<8x128xf32>
    %c0_24 = arith.constant 0 : index
    %c128_25 = arith.constant 128 : index
    %50 = vector.load %arg8[%c0_24, %c128_25] : memref<8x256xf32, #tpu.memory_space<vmem>>, vector<8x128xf32>
    tpu.vector_store %arg8[%c0_24, %c128_25], %49 {strides = array<i32>} : memref<8x256xf32, #tpu.memory_space<vmem>>, vector<8x128xf32>,
    %c0_26 = arith.constant 0 : index
    %c0_27 = arith.constant 0 : index
    %51 = vector.load %arg8[%c0_26, %c0_27] : memref<8x256xf32, #tpu.memory_space<vmem>>, vector<8x256xf32>
    %c0_28 = arith.constant 0 : index
    %c0_29 = arith.constant 0 : index
    %52 = vector.load %arg5[%c0_28, %c0_29] : memref<1x256xf32, #tpu.memory_space<vmem>>, vector<1x256xf32>
    %53 = vector.broadcast %52 : vector<1x256xf32> to vector<8x256xf32>
    %54 = arith.mulf %51, %53 : vector<8x256xf32>
    %c0_30 = arith.constant 0 : index
    %c0_31 = arith.constant 0 : index
    %55 = vector.load %arg6[%c0_30, %c0_31] : memref<1x256xf32, #tpu.memory_space<vmem>>, vector<1x256xf32>
    %56 = vector.broadcast %55 : vector<1x256xf32> to vector<8x256xf32>
    %57 = arith.addf %54, %56 : vector<8x256xf32>
    %c0_32 = arith.constant 0 : index
    %c0_33 = arith.constant 0 : index
    %58 = vector.load %arg7[%c0_32, %c0_33] : memref<8x256xf32, #tpu.memory_space<vmem>>, vector<8x256xf32>
    tpu.vector_store %arg7[%c0_32, %c0_33], %57 {strides = array<i32>} : memref<8x256xf32, #tpu.memory_space<vmem>>, vector<8x256xf32>,
    return
  }
  func.func @transform_0(%arg0: i32, %arg1: i32) -> (i32, i32) {
    %c0_i32 = arith.constant 0 : i32
    %c0_i32_0 = arith.constant 0 : i32
    return %arg0, %c0_i32 : i32, i32
  }
  func.func @transform_1(%arg0: i32, %arg1: i32) -> (i32, i32) {
    %c0_i32 = arith.constant 0 : i32
    %c0_i32_0 = arith.constant 0 : i32
    return %c0_i32, %arg1 : i32, i32
  }
  func.func @transform_2(%arg0: i32, %arg1: i32) -> (i32, i32) {
    %c0_i32 = arith.constant 0 : i32
    %c0_i32_0 = arith.constant 0 : i32
    return %c0_i32, %arg1 : i32, i32
  }
  func.func @transform_3(%arg0: i32, %arg1: i32) -> (i32, i32) {
    %c0_i32 = arith.constant 0 : i32
    %c0_i32_0 = arith.constant 0 : i32
    return %c0_i32, %arg1 : i32, i32
  }
  func.func @transform_4(%arg0: i32, %arg1: i32) -> (i32, i32) {
    %c0_i32 = arith.constant 0 : i32
    %c0_i32_0 = arith.constant 0 : i32
    return %c0_i32, %arg1 : i32, i32
  }
  func.func @transform_5(%arg0: i32, %arg1: i32) -> (i32, i32) {
    %c0_i32 = arith.constant 0 : i32
    return %arg0, %arg1 : i32, i32
  }
}

</mosaic_0001>

<llo_original>
// kernel: tpu_custom_call.1
$region0: #{tpu_custom_call.1}
  #allocation0 [shape = 'u32[]', space=smem, size = 0x4, offset = 0x4, fixed_abs, tag = 'smem constant byte address 0x4 - core index']
  #allocation1 [shape = 'u32[144,128]{1,0:T(1,128)}', space=vmem, size = 0x12000, scoped, tag = 'internal scratch']
  #allocation2 [shape = 'f32[8,256]{1,0:T(8,128)}', space=vmem, size = 0x2000, scoped, tag = 'scratch operand']
  %s0 = inlined_call_operand.hbm [shape: f32[8,256], index: 0, kind: input, shape index: {}]
  %s1 = inlined_call_operand.hbm [shape: f32[256,512], index: 1, kind: input, shape index: {}]
  %s2 = inlined_call_operand.hbm [shape: f32[1,512], index: 2, kind: input, shape index: {}]
  %s3 = inlined_call_operand.vmem [shape: f32[1,512], index: 3, kind: input, shape index: {}]
  %s4 = inlined_call_operand.hbm [shape: f32[1,512], index: 4, kind: input, shape index: {}]
  %s5 = inlined_call_operand.hbm [shape: f32[8,512], index: 5, kind: output, shape index: {}]
  %s6 = sld [smem:[#allocation0]]
  $region69: #{tpu_custom_call.1} parent=0
    _
  %s8 = ssub.s32 1, %s6
  %s9 = scalar_select 0, %s8, %s6
  $region1: #{tpu_custom_call.1} parent=0
    #allocation3 [shape = 'u8[8192]{0}', space=vmem, size = 0x2000, scoped, tag = 'input window, operand 0, single buffered']
    #allocation4 [shape = 's32[2]{0}', space=sflag, size = 0x8, scoped, tag = 'scoped memory for tpu_custom_call.1']
    #allocation5 [shape = 's32[2]{0}', space=sflag, size = 0x8, scoped, tag = 'scoped memory for tpu_custom_call.1']
    #allocation6 [shape = 'u8[524288]{0}', space=vmem, size = 0x80000, scoped, tag = 'input window, operand 1']
    #allocation7 [shape = 's32[2]{0}', space=sflag, size = 0x8, scoped, tag = 'scoped memory for tpu_custom_call.1']
    #allocation8 [shape = 'u8[2048]{0}', space=vmem, size = 0x800, scoped, tag = 'input window, operand 2']
    #allocation9 [shape = 'u8[2048]{0}', space=vmem, size = 0x800, scoped, tag = 'input window, operand 4']
    #allocation10 [shape = 's32[2]{0}', space=sflag, size = 0x8, scoped, tag = 'scoped memory for tpu_custom_call.1']
    #allocation11 [shape = 'u8[16384]{0}', space=vmem, size = 0x4000, scoped, tag = 'output window, operand 0']
    %10 = vsyncpa [#allocation4], 0
    %11 = vsyncpa [#allocation7], 0
    %s12 = scalar_lea.sflag [#allocation7], 1
    %13 = vsyncpa %s12, 0
    %14 = vsyncpa [#allocation10], 0
    %s15 = scalar_lea.sflag [#allocation10], 1
    %16 = vsyncpa %s15, 0
    %17 = vsyncpa [#allocation5], 0
    %s18 = scalar_lea.sflag [#allocation5], 1
    %19 = vsyncpa %s18, 0
    loop: start=0, step=1, limit=4
    $region2: #{tpu_custom_call.1} parent=1 // loop_pre_header
      _
    $region3: #{tpu_custom_call.1} parent=1 // loop_header
      %s21 = sphi 0, %s25
      %p22 = scmp.ge.s32.totalorder %s21, 4
      %s28 = sphi 0, %s40
      %s29 = sphi 0, %s36
      %s30 = sphi 0, %s28
      %s31 = sphi 0, %s29
      %s32 = sphi 0, %s30
      %s33 = sphi 0, %s31
      %s43 = sphi 0, %s45
      %s46 = sphi 0, %s43
      %s47 = sphi 0, %s46
      %s63 = sphi 0, %s47
      %s69 = sphi 0, %s71
      %s72 = sphi 0, %s69
      %s73 = sphi 0, %s72
      %s89 = sphi 0, %s73
      %s95 = sphi 0, %s97
      %s98 = sphi 0, %s95
      %s99 = sphi 0, %s98
      %s115 = sphi 0, %s99
      %s121 = sphi 0, %s123
      %s124 = sphi 0, %s121
      %s125 = sphi 0, %s124
      %s141 = sphi 0, %s125
      %s147 = sphi 0, %s149
      %s150 = sphi 0, %s147
      %s151 = sphi 0, %s150
      %s167 = sphi 0, %s151
      %s175 = sphi 0, %s177
      %s178 = sphi 0, %s175
      %s179 = sphi 0, %s178
      %s195 = sphi 0, %s179
    $region4: #{tpu_custom_call.1} parent=1 // loop_header_branch
      %24 = sbr.rel (%p22) target = $region8
    $region5: #{tpu_custom_call.1} parent=1 // loop_body
      %s26 = ssub.s32 %s21, 1
      %s27 = ssub.s32 %s21, 2
      %s34 = sadd.s32 1, %s29
      %p35 = scmp.ge.s32.totalorder %s34, 2
      %s36 = scalar_select %p35, 0, %s34
      %s37 = sadd.s32 1, %s28
      %s38 = scalar_select %p35, %s37, %s28
      %p39 = scmp.ge.s32.totalorder %s38, 1
      %s40 = scalar_select %p39, 0, %s38
      %s41 = ssub.s32 %s28, %s40
      %p42 = scmp.eq.s32.totalorder %s41, 0
      %s44 = sadd.s32 %s43, 1
      %s45 = scalar_select %p42, %s43, %s44
      %p48 = pneg %p42
      %p49 = scmp.eq.s32.totalorder %s21, 1
      %p50 = por %p48, %p49
      %p51 = scmp.ne.s32.totalorder %s43, %s46
      %p52 = scmp.eq.s32.totalorder %s21, 0
      %p53 = por %p51, %p52
      %p54 = scmp.ne.s32.totalorder %s43, %s46
      %p55 = scmp.eq.s32.totalorder %s26, 1
      %p56 = por %p54, %p55
      %p57 = scmp.ne.s32.totalorder %s46, %s47
      %p58 = scmp.eq.s32.totalorder %s26, 0
      %p59 = por %p57, %p58
      %p60 = scmp.ne.s32.totalorder %s46, %s47
      %p61 = scmp.eq.s32.totalorder %s27, 1
      %p62 = por %p60, %p61
      %p64 = scmp.ne.s32.totalorder %s47, %s63
      %p65 = scmp.eq.s32.totalorder %s27, 0
      %p66 = por %p64, %p65
      %s67 = ssub.s32 %s29, %s36
      %p68 = scmp.eq.s32.totalorder %s67, 0
      %s70 = sadd.s32 %s69, 1
      %s71 = scalar_select %p68, %s69, %s70
      %p74 = pneg %p68
      %p75 = scmp.eq.s32.totalorder %s21, 1
      %p76 = por %p74, %p75
      %p77 = scmp.ne.s32.totalorder %s69, %s72
      %p78 = scmp.eq.s32.totalorder %s21, 0
      %p79 = por %p77, %p78
      %p80 = scmp.ne.s32.totalorder %s69, %s72
      %p81 = scmp.eq.s32.totalorder %s26, 1
      %p82 = por %p80, %p81
      %p83 = scmp.ne.s32.totalorder %s72, %s73
      %p84 = scmp.eq.s32.totalorder %s26, 0
      %p85 = por %p83, %p84
      %p86 = scmp.ne.s32.totalorder %s72, %s73
      %p87 = scmp.eq.s32.totalorder %s27, 1
      %p88 = por %p86, %p87
      %p90 = scmp.ne.s32.totalorder %s73, %s89
      %p91 = scmp.eq.s32.totalorder %s27, 0
      %p92 = por %p90, %p91
      %s93 = ssub.s32 %s29, %s36
      %p94 = scmp.eq.s32.totalorder %s93, 0
      %s96 = sadd.s32 %s95, 1
      %s97 = scalar_select %p94, %s95, %s96
      %p100 = pneg %p94
      %p101 = scmp.eq.s32.totalorder %s21, 1
      %p102 = por %p100, %p101
      %p103 = scmp.ne.s32.totalorder %s95, %s98
      %p104 = scmp.eq.s32.totalorder %s21, 0
      %p105 = por %p103, %p104
      %p106 = scmp.ne.s32.totalorder %s95, %s98
      %p107 = scmp.eq.s32.totalorder %s26, 1
      %p108 = por %p106, %p107
      %p109 = scmp.ne.s32.totalorder %s98, %s99
      %p110 = scmp.eq.s32.totalorder %s26, 0
      %p111 = por %p109, %p110
      %p112 = scmp.ne.s32.totalorder %s98, %s99
      %p113 = scmp.eq.s32.totalorder %s27, 1
      %p114 = por %p112, %p113
      %p116 = scmp.ne.s32.totalorder %s99, %s115
      %p117 = scmp.eq.s32.totalorder %s27, 0
      %p118 = por %p116, %p117
      %s119 = ssub.s32 %s29, %s36
      %p120 = scmp.eq.s32.totalorder %s119, 0
      %s122 = sadd.s32 %s121, 1
      %s123 = scalar_select %p120, %s121, %s122
      %p126 = pneg %p120
      %p127 = scmp.eq.s32.totalorder %s21, 1
      %p128 = por %p126, %p127
      %p129 = scmp.ne.s32.totalorder %s121, %s124
      %p130 = scmp.eq.s32.totalorder %s21, 0
      %p131 = por %p129, %p130
      %p132 = scmp.ne.s32.totalorder %s121, %s124
      %p133 = scmp.eq.s32.totalorder %s26, 1
      %p134 = por %p132, %p133
      %p135 = scmp.ne.s32.totalorder %s124, %s125
      %p136 = scmp.eq.s32.totalorder %s26, 0
      %p137 = por %p135, %p136
      %p138 = scmp.ne.s32.totalorder %s124, %s125
      %p139 = scmp.eq.s32.totalorder %s27, 1
      %p140 = por %p138, %p139
      %p142 = scmp.ne.s32.totalorder %s125, %s141
      %p143 = scmp.eq.s32.totalorder %s27, 0
      %p144 = por %p142, %p143
      %s145 = ssub.s32 %s29, %s36
      %p146 = scmp.eq.s32.totalorder %s145, 0
      %s148 = sadd.s32 %s147, 1
      %s149 = scalar_select %p146, %s147, %s148
      %p152 = pneg %p146
      %p153 = scmp.eq.s32.totalorder %s21, 1
      %p154 = por %p152, %p153
      %p155 = scmp.ne.s32.totalorder %s147, %s150
      %p156 = scmp.eq.s32.totalorder %s21, 0
      %p157 = por %p155, %p156
      %p158 = scmp.ne.s32.totalorder %s147, %s150
      %p159 = scmp.eq.s32.totalorder %s26, 1
      %p160 = por %p158, %p159
      %p161 = scmp.ne.s32.totalorder %s150, %s151
      %p162 = scmp.eq.s32.totalorder %s26, 0
      %p163 = por %p161, %p162
      %p164 = scmp.ne.s32.totalorder %s150, %s151
      %p165 = scmp.eq.s32.totalorder %s27, 1
      %p166 = por %p164, %p165
      %p168 = scmp.ne.s32.totalorder %s151, %s167
      %p169 = scmp.eq.s32.totalorder %s27, 0
      %p170 = por %p168, %p169
      %s171 = ssub.s32 %s28, %s40
      %s172 = ssub.s32 %s29, %s36
      %s173 = sor.u32 %s171, %s172
      %p174 = scmp.eq.s32.totalorder %s173, 0
      %s176 = sadd.s32 %s175, 1
      %s177 = scalar_select %p174, %s175, %s176
      %p180 = pneg %p174
      %p181 = scmp.eq.s32.totalorder %s21, 1
      %p182 = por %p180, %p181
      %p183 = scmp.ne.s32.totalorder %s175, %s178
      %p184 = scmp.eq.s32.totalorder %s21, 0
      %p185 = por %p183, %p184
      %p186 = scmp.ne.s32.totalorder %s175, %s178
      %p187 = scmp.eq.s32.totalorder %s26, 1
      %p188 = por %p186, %p187
      %p189 = scmp.ne.s32.totalorder %s178, %s179
      %p190 = scmp.eq.s32.totalorder %s26, 0
      %p191 = por %p189, %p190
      %p192 = scmp.ne.s32.totalorder %s178, %s179
      %p193 = scmp.eq.s32.totalorder %s27, 1
      %p194 = por %p192, %p193
      %p196 = scmp.ne.s32.totalorder %s179, %s195
      %p197 = scmp.eq.s32.totalorder %s27, 0
      %p198 = por %p196, %p197
      %p199 = scmp.le.s32.totalorder 1, %s21
      %p200 = scmp.lt.s32.totalorder %s21, 3
      %p201 = pnand %p199, %p200
      %p202 = pneg %p201
      // Predicated region
      $region9: #{tpu_custom_call.1} parent=5 // pred_check
        _
      $region10: #{tpu_custom_call.1} parent=5 // pred_check_branch
        %204 = sbr.rel (%p201) target = $region12
      $region11: #{tpu_custom_call.1} parent=5 // pred_region
        %s205 = ssub.s32 %s21, 1
        // Predicated region
        $region13: #{tpu_custom_call.1} parent=11 // pred_check
          %p206 = pneg %p59
        $region14: #{tpu_custom_call.1} parent=11 // pred_check_branch
          %208 = sbr.rel (%p206) target = $region16
        $region15: #{tpu_custom_call.1} parent=11 // pred_region
          %s210 = ssub.s32 256, 256
          %211 = vsyncadd [#allocation4], %s210
          %s212 = smul.addr %s30, 2
          %s213 = smul.addr %s212, 128
          %s214 = scalar_lea.hbm %s0, %s213
          %s216 = sshll.u32 [#allocation3], 4
          %s217 = int_to_ptr.vmem [resolvable:$true] %s216
          %219 = dma.hbm_to_vmem [thread:$0]  %s214, 256, %s217, [#allocation4]
        $region16: #{tpu_custom_call.1} parent=11 // pred_fallthru
          _
      $region12: #{tpu_custom_call.1} parent=5 // pred_fallthru
        _
      %p220 = scmp.lt.s32.totalorder %s21, 2
      // Predicated region
      $region17: #{tpu_custom_call.1} parent=5 // pred_check
        %p221 = pneg %p220
      $region18: #{tpu_custom_call.1} parent=5 // pred_check_branch
        %223 = sbr.rel (%p221) target = $region20
      $region19: #{tpu_custom_call.1} parent=5 // pred_region
        // Predicated region
        $region21: #{tpu_custom_call.1} parent=19 // pred_check
          %p224 = pneg %p79
        $region22: #{tpu_custom_call.1} parent=19 // pred_check_branch
          %226 = sbr.rel (%p224) target = $region24
        $region23: #{tpu_custom_call.1} parent=19 // pred_region
          %s227 = sand.u32 %s21, 1
          %s228 = scalar_lea.sflag [#allocation7], %s227
          %s229 = sand.u32 %s69, 1
          %s230 = smul.addr %s229, 512
          %s231 = scalar_lea.vmem [#allocation6], %s230
          %s232 = smul.u32 2, %s29
          %s234 = ssub.s32 8192, 8192
          %235 = vsyncadd %s228, %s234
          %s236 = smul.addr %s232, 128
          %s237 = scalar_lea.hbm %s1, %s236
          %s238 = sshll.u32 %s231, 4
          %s239 = int_to_ptr.vmem [resolvable:$true] %s238
          %244 = dma.hbm_to_vmem [thread:$0]  %s237, 8192, %s239, %s228, 512, 256, 16
        $region24: #{tpu_custom_call.1} parent=19 // pred_fallthru
          _
        // Predicated region
        $region25: #{tpu_custom_call.1} parent=19 // pred_check
          %p245 = pneg %p105
        $region26: #{tpu_custom_call.1} parent=19 // pred_check_branch
          %247 = sbr.rel (%p245) target = $region28
        $region27: #{tpu_custom_call.1} parent=19 // pred_region
          %s248 = sand.u32 %s21, 1
          %s249 = scalar_lea.sflag [#allocation7], %s248
          %s250 = sand.u32 %s95, 1
          %s251 = smul.addr %s250, 2
          %s252 = scalar_lea.vmem [#allocation8], %s251
          %s253 = smul.u32 2, %s29
          %s255 = ssub.s32 32, 32
          %256 = vsyncadd %s249, %s255
          %s257 = smul.addr %s253, 16
          %s258 = scalar_lea.hbm %s2, %s257
          %s260 = sshll.u32 %s252, 4
          %s261 = int_to_ptr.vmem [resolvable:$true] %s260
          %263 = dma.hbm_to_vmem [thread:$0]  %s258, 32, %s261, %s249
        $region28: #{tpu_custom_call.1} parent=19 // pred_fallthru
          _
        // Predicated region
        $region29: #{tpu_custom_call.1} parent=19 // pred_check
          %p264 = pneg %p131
        $region30: #{tpu_custom_call.1} parent=19 // pred_check_branch
          %266 = sbr.rel (%p264) target = $region32
        $region31: #{tpu_custom_call.1} parent=19 // pred_region
          %s267 = smul.u32 2, %s29
          %p268 = scmp.lt.s32.totalorder %s267, 3
          %s269 = scalar_select %p268, %s267, 3
          %s270 = scalar_lea.vmem %s3, %s269
          %s271 = smul.u32 2, %s29
        $region32: #{tpu_custom_call.1} parent=19 // pred_fallthru
          _
        // Predicated region
        $region33: #{tpu_custom_call.1} parent=19 // pred_check
          %p272 = pneg %p157
        $region34: #{tpu_custom_call.1} parent=19 // pred_check_branch
          %274 = sbr.rel (%p272) target = $region36
        $region35: #{tpu_custom_call.1} parent=19 // pred_region
          %s275 = sand.u32 %s147, 1
          %s276 = scalar_lea.sflag [#allocation10], %s275
          %s277 = sand.u32 %s147, 1
          %s278 = smul.addr %s277, 2
          %s279 = scalar_lea.vmem [#allocation9], %s278
          %s280 = smul.u32 2, %s29
          %s282 = ssub.s32 32, 32
          %283 = vsyncadd %s276, %s282
          %s284 = smul.addr %s280, 16
          %s285 = scalar_lea.hbm %s4, %s284
          %s287 = sshll.u32 %s279, 4
          %s288 = int_to_ptr.vmem [resolvable:$true] %s287
          %290 = dma.hbm_to_vmem [thread:$0]  %s285, 32, %s288, %s276
        $region36: #{tpu_custom_call.1} parent=19 // pred_fallthru
          _
      $region20: #{tpu_custom_call.1} parent=5 // pred_fallthru
        _
      %p291 = scmp.le.s32.totalorder 1, %s21
      %p292 = scmp.lt.s32.totalorder %s21, 3
      %p293 = pnand %p291, %p292
      %p294 = pneg %p293
      // Predicated region
      $region37: #{tpu_custom_call.1} parent=5 // pred_check
        _
      $region38: #{tpu_custom_call.1} parent=5 // pred_check_branch
        %296 = sbr.rel (%p293) target = $region40
      $region39: #{tpu_custom_call.1} parent=5 // pred_region
        %s297 = ssub.s32 %s21, 1
        // Predicated region
        $region41: #{tpu_custom_call.1} parent=39 // pred_check
          %p298 = pneg %p59
        $region42: #{tpu_custom_call.1} parent=39 // pred_check_branch
          %300 = sbr.rel (%p298) target = $region44
        $region43: #{tpu_custom_call.1} parent=39 // pred_region
          %301 = dma.done [#allocation4], 256
        $region44: #{tpu_custom_call.1} parent=39 // pred_fallthru
          _
        %s302 = sand.u32 %s26, 1
        %s303 = scalar_lea.sflag [#allocation7], %s302
        %s304 = sand.u32 %s72, 1
        %s305 = smul.addr %s304, 512
        %s306 = scalar_lea.vmem [#allocation6], %s305
        // Predicated region
        $region45: #{tpu_custom_call.1} parent=39 // pred_check
          %p307 = pneg %p85
        $region46: #{tpu_custom_call.1} parent=39 // pred_check_branch
          %309 = sbr.rel (%p307) target = $region48
        $region47: #{tpu_custom_call.1} parent=39 // pred_region
          %310 = dma.done %s303, 8192
        $region48: #{tpu_custom_call.1} parent=39 // pred_fallthru
          _
        %s311 = sand.u32 %s26, 1
        %s312 = scalar_lea.sflag [#allocation7], %s311
        %s313 = sand.u32 %s98, 1
        %s314 = smul.addr %s313, 2
        %s315 = scalar_lea.vmem [#allocation8], %s314
        // Predicated region
        $region49: #{tpu_custom_call.1} parent=39 // pred_check
          %p316 = pneg %p111
        $region50: #{tpu_custom_call.1} parent=39 // pred_check_branch
          %318 = sbr.rel (%p316) target = $region52
        $region51: #{tpu_custom_call.1} parent=39 // pred_region
          %319 = dma.done %s312, 32
        $region52: #{tpu_custom_call.1} parent=39 // pred_fallthru
          _
        %s320 = sand.u32 %s150, 1
        %s321 = scalar_lea.sflag [#allocation10], %s320
        %s322 = sand.u32 %s150, 1
        %s323 = smul.addr %s322, 2
        %s324 = scalar_lea.vmem [#allocation9], %s323
        // Predicated region
        $region53: #{tpu_custom_call.1} parent=39 // pred_check
          %p325 = pneg %p163
        $region54: #{tpu_custom_call.1} parent=39 // pred_check_branch
          %327 = sbr.rel (%p325) target = $region56
        $region55: #{tpu_custom_call.1} parent=39 // pred_region
          %328 = dma.done %s321, 32
        $region56: #{tpu_custom_call.1} parent=39 // pred_fallthru
          _
        %p329 = pneg %p59
        %p330 = pneg %p56
        %s331 = sand.u32 %s26, 1
        %s332 = scalar_lea.sflag [#allocation7], %s331
        %s333 = sand.u32 %s72, 1
        %s334 = smul.addr %s333, 512
        %s335 = scalar_lea.vmem [#allocation6], %s334
        %p336 = pneg %p85
        %p337 = pneg %p82
        %s338 = sand.u32 %s26, 1
        %s339 = scalar_lea.sflag [#allocation7], %s338
        %s340 = sand.u32 %s98, 1
        %s341 = smul.addr %s340, 2
        %s342 = scalar_lea.vmem [#allocation8], %s341
        %p343 = pneg %p111
        %p344 = pneg %p108
        %s345 = smul.u32 2, %s31
        %p346 = scmp.lt.s32.totalorder %s345, 3
        %s347 = scalar_select %p346, %s345, 3
        %s348 = scalar_lea.vmem %s3, %s347
        %p349 = pneg %p137
        %p350 = pneg %p134
        %s351 = sand.u32 %s150, 1
        %s352 = scalar_lea.sflag [#allocation10], %s351
        %s353 = sand.u32 %s150, 1
        %s354 = smul.addr %s353, 2
        %s355 = scalar_lea.vmem [#allocation9], %s354
        %p356 = pneg %p163
        %p357 = pneg %p160
        %p358 = pneg %p191
        %p359 = pneg %p188
        %s360 = sand.u32 %s178, 1
        %s361 = scalar_lea.sflag [#allocation5], %s360
        %s362 = sand.u32 %s178, 1
        %s363 = smul.addr %s362, 16
        %s364 = scalar_lea.vmem [#allocation11], %s363
        %s365 = smul.u32 2, %s31
        %s366 = smul.u32 2, %s31
        %s367 = smul.u32 2, %s31
        %p368 = scmp.lt.s32.totalorder %s367, 3
        %s369 = scalar_select %p368, %s367, 3
        %s370 = scalar_lea.vmem %s3, %s369
        %s371 = smul.u32 2, %s31
        %s372 = smul.u32 2, %s31
        %s373 = smul.u32 2, %s31
        %v374 = vld [vmem:[#allocation3] sm:$0xff]
        %v375 = vld [vmem:[#allocation3 + $0x8] sm:$0xff]
        %v376 = vld [vmem:[%s306] sm:$0xff]
        %v377 = vld [vmem:[%s306 + $0x8] sm:$0xff]
        %v378 = vld [vmem:[%s306 + $0x10] sm:$0xff]
        %v379 = vld [vmem:[%s306 + $0x18] sm:$0xff]
        %v380 = vld [vmem:[%s306 + $0x20] sm:$0xff]
        %v381 = vld [vmem:[%s306 + $0x28] sm:$0xff]
        %v382 = vld [vmem:[%s306 + $0x30] sm:$0xff]
        %v383 = vld [vmem:[%s306 + $0x38] sm:$0xff]
        %v384 = vld [vmem:[%s306 + $0x40] sm:$0xff]
        %v385 = vld [vmem:[%s306 + $0x48] sm:$0xff]
        %v386 = vld [vmem:[%s306 + $0x50] sm:$0xff]
        %v387 = vld [vmem:[%s306 + $0x58] sm:$0xff]
        %v388 = vld [vmem:[%s306 + $0x60] sm:$0xff]
        %v389 = vld [vmem:[%s306 + $0x68] sm:$0xff]
        %v390 = vld [vmem:[%s306 + $0x70] sm:$0xff]
        %v391 = vld [vmem:[%s306 + $0x78] sm:$0xff]
        %v392 = vld [vmem:[%s306 + $0x80] sm:$0xff]
        %v393 = vld [vmem:[%s306 + $0x88] sm:$0xff]
        %v394 = vld [vmem:[%s306 + $0x90] sm:$0xff]
        %v395 = vld [vmem:[%s306 + $0x98] sm:$0xff]
        %v396 = vld [vmem:[%s306 + $0xa0] sm:$0xff]
        %v397 = vld [vmem:[%s306 + $0xa8] sm:$0xff]
        %v398 = vld [vmem:[%s306 + $0xb0] sm:$0xff]
        %v399 = vld [vmem:[%s306 + $0xb8] sm:$0xff]
        %v400 = vld [vmem:[%s306 + $0xc0] sm:$0xff]
        %v401 = vld [vmem:[%s306 + $0xc8] sm:$0xff]
        %v402 = vld [vmem:[%s306 + $0xd0] sm:$0xff]
        %v403 = vld [vmem:[%s306 + $0xd8] sm:$0xff]
        %v404 = vld [vmem:[%s306 + $0xe0] sm:$0xff]
        %v405 = vld [vmem:[%s306 + $0xe8] sm:$0xff]
        %v406 = vld [vmem:[%s306 + $0xf0] sm:$0xff]
        %v407 = vld [vmem:[%s306 + $0xf8] sm:$0xff]
        %v408 = vld [vmem:[%s306 + $0x100] sm:$0xff]
        %v409 = vld [vmem:[%s306 + $0x108] sm:$0xff]
        %v410 = vld [vmem:[%s306 + $0x110] sm:$0xff]
        %v411 = vld [vmem:[%s306 + $0x118] sm:$0xff]
        %v412 = vld [vmem:[%s306 + $0x120] sm:$0xff]
        %v413 = vld [vmem:[%s306 + $0x128] sm:$0xff]
        %v414 = vld [vmem:[%s306 + $0x130] sm:$0xff]
        %v415 = vld [vmem:[%s306 + $0x138] sm:$0xff]
        %v416 = vld [vmem:[%s306 + $0x140] sm:$0xff]
        %v417 = vld [vmem:[%s306 + $0x148] sm:$0xff]
        %v418 = vld [vmem:[%s306 + $0x150] sm:$0xff]
        %v419 = vld [vmem:[%s306 + $0x158] sm:$0xff]
        %v420 = vld [vmem:[%s306 + $0x160] sm:$0xff]
        %v421 = vld [vmem:[%s306 + $0x168] sm:$0xff]
        %v422 = vld [vmem:[%s306 + $0x170] sm:$0xff]
        %v423 = vld [vmem:[%s306 + $0x178] sm:$0xff]
        %v424 = vld [vmem:[%s306 + $0x180] sm:$0xff]
        %v425 = vld [vmem:[%s306 + $0x188] sm:$0xff]
        %v426 = vld [vmem:[%s306 + $0x190] sm:$0xff]
        %v427 = vld [vmem:[%s306 + $0x198] sm:$0xff]
        %v428 = vld [vmem:[%s306 + $0x1a0] sm:$0xff]
        %v429 = vld [vmem:[%s306 + $0x1a8] sm:$0xff]
        %v430 = vld [vmem:[%s306 + $0x1b0] sm:$0xff]
        %v431 = vld [vmem:[%s306 + $0x1b8] sm:$0xff]
        %v432 = vld [vmem:[%s306 + $0x1c0] sm:$0xff]
        %v433 = vld [vmem:[%s306 + $0x1c8] sm:$0xff]
        %v434 = vld [vmem:[%s306 + $0x1d0] sm:$0xff]
        %v435 = vld [vmem:[%s306 + $0x1d8] sm:$0xff]
        %v436 = vld [vmem:[%s306 + $0x1e0] sm:$0xff]
        %v437 = vld [vmem:[%s306 + $0x1e8] sm:$0xff]
        %v438 = vld [vmem:[%s306 + $0x1f0] sm:$0xff]
        %v439 = vld [vmem:[%s306 + $0x1f8] sm:$0xff]
        %v440 = vld [vmem:[%s315] sm:$0x3]
        %v442 = vlaneseq
        %v443 = vshrl.u32 %v442, 7
        %v444 = vsub.s32 0, %v443
        %v445 = vrot.slane %v440, %v444
        %v446 = vlaneseq
        %v447 = vshrl.u32 %v446, 7
        %v448 = vsub.s32 1, %v447
        %v449 = vrot.slane %v440, %v448
        %452 = vmatprep.subr.mxu0 %v407
        %453 = vmatpush1.msra.mxu0 %v406
        %454 = vmatprep.subr.mxu0 %v405
        %455 = vmatpush1.msra.mxu0 %v404
        %456 = vmatprep.subr.mxu0 %v403
        %457 = vmatpush1.msra.mxu0 %v402
        %458 = vmatprep.subr.mxu0 %v401
        %459 = vmatpush1.msra.mxu0 %v400
        %460 = vmatprep.subr.mxu0 %v399
        %461 = vmatpush1.msra.mxu0 %v398
        %462 = vmatprep.subr.mxu0 %v397
        %463 = vmatpush1.msra.mxu0 %v396
        %464 = vmatprep.subr.mxu0 %v395
        %465 = vmatpush1.msra.mxu0 %v394
        %466 = vmatprep.subr.mxu0 %v393
        %467 = vmatpush1.msra.mxu0 %v392
        %468 = vmatprep.subr.mxu0 %v391
        %469 = vmatpush1.msra.mxu0 %v390
        %470 = vmatprep.subr.mxu0 %v389
        %471 = vmatpush1.msra.mxu0 %v388
        %472 = vmatprep.subr.mxu0 %v387
        %473 = vmatpush1.msra.mxu0 %v386
        %474 = vmatprep.subr.mxu0 %v385
        %475 = vmatpush1.msra.mxu0 %v384
        %476 = vmatprep.subr.mxu0 %v383
        %477 = vmatpush1.msra.mxu0 %v382
        %478 = vmatprep.subr.mxu0 %v381
        %479 = vmatpush1.msra.mxu0 %v380
        %480 = vmatprep.subr.mxu0 %v379
        %481 = vmatpush1.msra.mxu0 %v378
        %482 = vmatprep.subr.mxu0 %v377
        %483 = vmatpush1.msra.mxu0 %v376
        %484 = vmatprep.subr.mxu0 %v439
        %485 = vmatpush2.msra.mxu0 %v438
        %486 = vmatprep.subr.mxu0 %v437
        %487 = vmatpush2.msra.mxu0 %v436
        %488 = vmatprep.subr.mxu0 %v435
        %489 = vmatpush2.msra.mxu0 %v434
        %490 = vmatprep.subr.mxu0 %v433
        %491 = vmatpush2.msra.mxu0 %v432
        %492 = vmatprep.subr.mxu0 %v431
        %493 = vmatpush2.msra.mxu0 %v430
        %494 = vmatprep.subr.mxu0 %v429
        %495 = vmatpush2.msra.mxu0 %v428
        %496 = vmatprep.subr.mxu0 %v427
        %497 = vmatpush2.msra.mxu0 %v426
        %498 = vmatprep.subr.mxu0 %v425
        %499 = vmatpush2.msra.mxu0 %v424
        %500 = vmatprep.subr.mxu0 %v423
        %501 = vmatpush2.msra.mxu0 %v422
        %502 = vmatprep.subr.mxu0 %v421
        %503 = vmatpush2.msra.mxu0 %v420
        %504 = vmatprep.subr.mxu0 %v419
        %505 = vmatpush2.msra.mxu0 %v418
        %506 = vmatprep.subr.mxu0 %v417
        %507 = vmatpush2.msra.mxu0 %v416
        %508 = vmatprep.subr.mxu0 %v415
        %509 = vmatpush2.msra.mxu0 %v414
        %510 = vmatprep.subr.mxu0 %v413
        %511 = vmatpush2.msra.mxu0 %v412
        %512 = vmatprep.subr.mxu0 %v411
        %513 = vmatpush2.msra.mxu0 %v410
        %514 = vmatprep.subr.mxu0 %v409
        %515 = vmatpush2.msra.mxu0 %v408
        %516 = vmatprep.mubr.f32.mxu0 %v375
        %517 = vmatmul.mubr.f32.gmra.mxu0 %v374
        %v518 = vpop.f32.mrf.mxu0
        %v519 = vadd.f32 %v445, %v518
        %v520 = vpop.f32.mrf.mxu0
        %v521 = vadd.f32 %v449, %v520
        %522 = vdwg.mxu0
        %523 = vst [vmem:[#allocation2] sm:$0xff] %v519
        %524 = vst [vmem:[#allocation2 + $0x8] sm:$0xff] %v521
        %v525 = vld [vmem:[#allocation2] sm:$0xff]
        %526 = vadd.xlane.f32.xlu0 %v525
        %v527 = vpop.xlane.xlu0 %526
        %v528 = vmul.f32 %v525, %v525
        %529 = vadd.xlane.f32.xlu0 %v528
        %v530 = vpop.xlane.xlu0 %529
        %v531 = vmul.f32 %v527, 0.0078125
        %v532 = vmul.f32 %v530, 0.0078125
        %v533 = vmul.f32 %v531, %v531
        %v534 = vsub.f32 %v532, %v533
        %v535 = vmax.f32 %v534, 0.0
        %v536 = vsub.f32 %v525, %v531
        %v537 = vadd.f32 %v535, 1e-05
        %v538 = vrsqrt.pop %v537
        %v539 = vmul.f32 %v536, %v538
        %540 = vst [vmem:[#allocation2] sm:$0xff] %v539
        %v541 = vld [vmem:[#allocation2 + $0x8] sm:$0xff]
        %542 = vadd.xlane.f32.xlu0 %v541
        %v543 = vpop.xlane.xlu0 %542
        %v544 = vmul.f32 %v541, %v541
        %545 = vadd.xlane.f32.xlu0 %v544
        %v546 = vpop.xlane.xlu0 %545
        %v547 = vmul.f32 %v543, 0.0078125
        %v548 = vmul.f32 %v546, 0.0078125
        %v549 = vmul.f32 %v547, %v547
        %v550 = vsub.f32 %v548, %v549
        %v551 = vmax.f32 %v550, 0.0
        %v552 = vsub.f32 %v541, %v547
        %v553 = vadd.f32 %v551, 1e-05
        %v554 = vrsqrt.pop %v553
        %v555 = vmul.f32 %v552, %v554
        %556 = vst [vmem:[#allocation2 + $0x8] sm:$0xff] %v555
        %v557 = vld [vmem:[#allocation2] sm:$0xff]
        %v558 = vld [vmem:[#allocation2 + $0x8] sm:$0xff]
        %v559 = vld [vmem:[%s370] sm:$0x3]
        %v561 = vlaneseq
        %v562 = vshrl.u32 %v561, 7
        %v563 = vsub.s32 0, %v562
        %v564 = vrot.slane %v559, %v563
        %v565 = vlaneseq
        %v566 = vshrl.u32 %v565, 7
        %v567 = vsub.s32 1, %v566
        %v568 = vrot.slane %v559, %v567
        %v571 = vmul.f32 %v557, %v564
        %v572 = vmul.f32 %v558, %v568
        %v573 = vld [vmem:[%s324] sm:$0x3]
        %v575 = vlaneseq
        %v576 = vshrl.u32 %v575, 7
        %v577 = vsub.s32 0, %v576
        %v578 = vrot.slane %v573, %v577
        %v579 = vlaneseq
        %v580 = vshrl.u32 %v579, 7
        %v581 = vsub.s32 1, %v580
        %v582 = vrot.slane %v573, %v581
        %v585 = vadd.f32 %v571, %v578
        %v586 = vadd.f32 %v572, %v582
        %587 = vst [vmem:[%s364] sm:$0xff] %v585
        %588 = vst [vmem:[%s364 + $0x8] sm:$0xff] %v586
        %s589 = sand.u32 %s178, 1
        %s590 = scalar_lea.sflag [#allocation5], %s589
        %s591 = sand.u32 %s178, 1
        %s592 = smul.addr %s591, 16
        %s593 = scalar_lea.vmem [#allocation11], %s592
        // Predicated region
        $region57: #{tpu_custom_call.1} parent=39 // pred_check
          %p594 = pneg %p188
        $region58: #{tpu_custom_call.1} parent=39 // pred_check_branch
          %596 = sbr.rel (%p594) target = $region60
        $region59: #{tpu_custom_call.1} parent=39 // pred_region
          %s597 = smul.u32 2, %s31
          %s599 = ssub.s32 256, 256
          %600 = vsyncadd %s590, %s599
          %s601 = smul.addr %s30, 4
          %s602 = sadd.s32 %s597, %s601
          %s603 = smul.addr %s602, 128
          %s604 = scalar_lea.hbm %s5, %s603
          %s606 = sshll.u32 %s593, 4
          %s607 = int_to_ptr.vmem [resolvable:$true] %s606
          %609 = dma.vmem_to_hbm [thread:$0]  %s607, 256, %s604, %s590
        $region60: #{tpu_custom_call.1} parent=39 // pred_fallthru
          _
      $region40: #{tpu_custom_call.1} parent=5 // pred_fallthru
        _
      %p610 = scmp.le.s32.totalorder 2, %s21
      // Predicated region
      $region61: #{tpu_custom_call.1} parent=5 // pred_check
        %p611 = pneg %p610
      $region62: #{tpu_custom_call.1} parent=5 // pred_check_branch
        %613 = sbr.rel (%p611) target = $region64
      $region63: #{tpu_custom_call.1} parent=5 // pred_region
        %s614 = ssub.s32 %s21, 2
        // Predicated region
        $region65: #{tpu_custom_call.1} parent=63 // pred_check
          %p615 = pneg %p194
        $region66: #{tpu_custom_call.1} parent=63 // pred_check_branch
          %617 = sbr.rel (%p615) target = $region68
        $region67: #{tpu_custom_call.1} parent=63 // pred_region
          %s618 = sand.u32 %s179, 1
          %s619 = scalar_lea.sflag [#allocation5], %s618
          %s620 = sand.u32 %s179, 1
          %s621 = smul.addr %s620, 16
          %s622 = scalar_lea.vmem [#allocation11], %s621
          %623 = dma.done %s619, 256
        $region68: #{tpu_custom_call.1} parent=63 // pred_fallthru
          _
      $region64: #{tpu_custom_call.1} parent=5 // pred_fallthru
        _
    $region6: #{tpu_custom_call.1} parent=1 // loop_footer
      %s25 = sadd.s32 1, %s21
    $region7: #{tpu_custom_call.1} parent=1 // loop_footer_branch
      %20 = sbr.rel target = $region3
    $region8: #{tpu_custom_call.1} parent=1 // loop_exit
      _
    %624 = vsyncpa [#allocation4], 1
    %s625 = scalar_lea.sflag [#allocation4], 1
    %626 = vsyncpa %s625, 1
    %627 = vsyncpa [#allocation7], 1
    %s628 = scalar_lea.sflag [#allocation7], 1
    %629 = vsyncpa %s628, 1
    %630 = vsyncpa [#allocation10], 1
    %s631 = scalar_lea.sflag [#allocation10], 1
    %632 = vsyncpa %s631, 1
    %633 = vsyncpa [#allocation5], 1
    %s634 = scalar_lea.sflag [#allocation5], 1
    %635 = vsyncpa %s634, 1

</llo_original>
